<compile_context>
chip_gen: v6e
topology: v6e:2x2x1
jax: 0.10.0
libtpu: 0.0.40
codegen_flags: <defaults>
</compile_context>

<pallas_src>
import functools

import jax
import jax.numpy as jnp
from jax.experimental import pallas as pl
from jax.experimental.pallas import tpu as pltpu

LN_EPS = 1e-5


def _round_up(n, m):
    return ((n + m - 1) // m) * m


def _pick_vmem_limit(tile_rows, D, H, h_chunk):
    """Scoped-VMEM budget from actual buffer sizes, capped below physical."""
    weights = (D * H + H * D) * 2 + (H + 3 * D) * 4          # single-buffered
    io = 2 * (tile_rows * D * 4) * 2                         # x + out tiles, double-buffered
    hidden = tile_rows * min(H, h_chunk) * (4 + 2)           # f32 partial + bf16 operand
    acc = tile_rows * D * 4
    need = 2 * (weights + io + hidden + acc) + (16 << 20)    # 2x margin + headroom
    need = max(need, 32 << 20)
    try:
        phys = int(pltpu.get_tpu_info().vmem_capacity_bytes)
    except Exception:
        phys = 64 << 20                                      # v7x per-TC (most restrictive)
    return int(min(need, phys - (8 << 20)))


def ffn_kernel(x_ref, gamma_ref, beta_ref, w1_ref, b1_ref, w2_ref, b2_ref,
               o_ref, *, h_chunk):
    # --- LayerNorm over last dim (two-pass variance, f32) ---
    x = x_ref[...].astype(jnp.float32)                       # (tile_rows, D)
    mean = jnp.mean(x, axis=-1, keepdims=True)
    xc = x - mean
    var = jnp.mean(xc * xc, axis=-1, keepdims=True)
    inv = jax.lax.rsqrt(var + LN_EPS)
    xn = (xc * inv) * gamma_ref[...] + beta_ref[...]
    xn = xn.astype(jnp.bfloat16)                              # MXU operand

    H = w1_ref.shape[1]
    if H <= h_chunk:
        # Single pass: fuse bias + ReLU + bf16 cast so only a bf16 (tile_rows, H)
        # tensor survives into the second dot.
        h = jnp.maximum(
            jnp.dot(xn, w1_ref[...], preferred_element_type=jnp.float32)
            + b1_ref[...], 0.0).astype(jnp.bfloat16)
        y = jnp.dot(h, w2_ref[...], preferred_element_type=jnp.float32)
        y = y + b2_ref[...]
    else:
        # Chunk over the hidden dim: bounds the live f32 intermediate to
        # (tile_rows, h_chunk).  Static slices -> no dynamic-slice lowering cost.
        n_chunks = H // h_chunk
        y = jnp.zeros((xn.shape[0], w2_ref.shape[1]), jnp.float32)
        for c in range(n_chunks):
            lo = c * h_chunk
            hc = jnp.maximum(
                jnp.dot(xn, w1_ref[:, lo:lo + h_chunk],
                        preferred_element_type=jnp.float32)
                + b1_ref[:, lo:lo + h_chunk], 0.0).astype(jnp.bfloat16)
            y = y + jnp.dot(hc, w2_ref[lo:lo + h_chunk, :],
                            preferred_element_type=jnp.float32)
        y = y + b2_ref[...]

    # Dropout -> identity (inference)
    o_ref[...] = y.astype(o_ref.dtype)


def feed_forward_module(x, params, *, tile_rows=512, h_chunk=1024,
                        vmem_limit_bytes=None):
    """x: (batch, seq, dim) float32. Returns same shape/dtype."""
    gamma, beta, w1, b1, w2, b2 = params
    B, S, D = x.shape
    H = w1.shape[1]
    rows = B * S
    x2d = x.reshape(rows, D)

    # Row-tile choice: multiple of 8 (sublane); default 512 (multiple of 256)
    # keeps the v6e/v7x MXU fed and amortizes per-grid-step overhead.  If the
    # whole input fits in one tile, split it in two so v7x's second TensorCore
    # isn't idle under dimension_semantics=("parallel",).
    if rows <= 8:
        tile_rows = rows                              # block == full array dim
    else:
        tile_rows = max(8, (min(tile_rows, _round_up(rows, 8)) // 8) * 8)
        if tile_rows >= rows:
            tile_rows = _round_up(pl.cdiv(rows, 2), 8)
    grid = (pl.cdiv(rows, tile_rows),)                # ragged last block masked by Pallas

    # Hidden-dim chunking (only used when H doesn't fit a single clean pass).
    if H % h_chunk:
        h_chunk = H
    h_chunk = min(h_chunk, H)

    if vmem_limit_bytes is None:
        vmem_limit_bytes = _pick_vmem_limit(tile_rows, D, H, h_chunk)

    flops = 4 * rows * D * H                          # two matmuls, 2*rows*D*H each
    bytes_accessed = (2 * rows * D * 4                # x in + y out (f32)
                      + 2 * D * H * 2                 # bf16 weights (read once)
                      + (H + 3 * D) * 4)              # biases + gamma/beta

    kernel = functools.partial(ffn_kernel, h_chunk=h_chunk)
    inv1 = pl.Buffered(1)                             # grid-invariant -> single buffer

    out2d = pl.pallas_call(
        kernel,
        out_shape=jax.ShapeDtypeStruct((rows, D), x.dtype),
        grid_spec=pltpu.PrefetchScalarGridSpec(
            num_scalar_prefetch=0,
            grid=grid,
            in_specs=[
                pl.BlockSpec((tile_rows, D), lambda i: (i, 0)),               # x rows
                pl.BlockSpec((1, D), lambda i: (0, 0), pipeline_mode=inv1),   # gamma
                pl.BlockSpec((1, D), lambda i: (0, 0), pipeline_mode=inv1),   # beta
                pl.BlockSpec((D, H), lambda i: (0, 0), pipeline_mode=inv1),   # W1 (in,out) bf16
                pl.BlockSpec((1, H), lambda i: (0, 0), pipeline_mode=inv1),   # b1
                pl.BlockSpec((H, D), lambda i: (0, 0), pipeline_mode=inv1),   # W2 (in,out) bf16
                pl.BlockSpec((1, D), lambda i: (0, 0), pipeline_mode=inv1),   # b2
            ],
            out_specs=pl.BlockSpec((tile_rows, D), lambda i: (i, 0)),
        ),
        compiler_params=pltpu.CompilerParams(
            dimension_semantics=("parallel",),
            vmem_limit_bytes=int(vmem_limit_bytes),
        ),
        cost_estimate=pl.CostEstimate(
            flops=int(flops),
            transcendentals=int(rows),                # one rsqrt per row
            bytes_accessed=int(bytes_accessed)),
    )(x2d, gamma, beta, w1, b1, w2, b2)

    return out2d.reshape(B, S, D)


def make_params(key, dim, expansion_factor=4):
    """Deterministic synthetic parameters matching nn.LayerNorm + 2x nn.Linear.

    PyTorch Linear stores (out, in); weights here are kept (in, out) so the
    kernel does plain row-major matmuls.  Weights stored bf16 (MXU-native)."""
    hidden = dim * expansion_factor
    k1, k2, k3, k4 = jax.random.split(key, 4)
    gamma = jnp.ones((1, dim), jnp.float32)
    beta = jnp.zeros((1, dim), jnp.float32)
    w1 = ((jax.random.uniform(k1, (dim, hidden), jnp.float32) - 0.5)
          * (2.0 / jnp.sqrt(dim))).astype(jnp.bfloat16)
    b1 = (jax.random.uniform(k2, (1, hidden), jnp.float32) - 0.5) * (2.0 / jnp.sqrt(dim))
    w2 = ((jax.random.uniform(k3, (hidden, dim), jnp.float32) - 0.5)
          * (2.0 / jnp.sqrt(hidden))).astype(jnp.bfloat16)
    b2 = (jax.random.uniform(k4, (1, dim), jnp.float32) - 0.5) * (2.0 / jnp.sqrt(hidden))
    return gamma, beta, w1, b1, w2, b2


def reference_ffn(x, params, matmul_dtype=jnp.float32):
    """Pure-JAX reference.  matmul_dtype=bf16 mirrors the kernel's MXU operand
    casting; float32 is the exact PyTorch formulation."""
    gamma, beta, w1, b1, w2, b2 = params
    mean = jnp.mean(x, axis=-1, keepdims=True)
    var = jnp.mean((x - mean) ** 2, axis=-1, keepdims=True)
    xn = (x - mean) / jnp.sqrt(var + LN_EPS)
    xn = xn * gamma[0] + beta[0]
    h = jnp.dot(xn.astype(matmul_dtype), w1.astype(matmul_dtype),
                preferred_element_type=jnp.float32) + b1[0]
    h = jnp.maximum(h, 0.0)
    y = jnp.dot(h.astype(matmul_dtype), w2.astype(matmul_dtype),
                preferred_element_type=jnp.float32) + b2[0]
    return y


if __name__ == "__main__":
    # Lane-dense small demo: D=128 (full 128-lane vregs), H=512, rows=48.
    batch, seq, dim = 2, 24, 128
    key = jax.random.PRNGKey(0)
    kx, kp = jax.random.split(key)
    x = jax.random.normal(kx, (batch, seq, dim), jnp.float32)
    params = make_params(kp, dim, expansion_factor=4)

    ref_bf16 = reference_ffn(x, params, matmul_dtype=jnp.bfloat16)
    ref_f32 = reference_ffn(x, params, matmul_dtype=jnp.float32)

    # Default path: 48 rows auto-split into two 24-row tiles (grid=2), single
    # pass over the hidden dim.
    out = jax.block_until_ready(feed_forward_module(x, params))
    assert out.shape == x.shape and out.dtype == x.dtype
    assert jnp.allclose(out, ref_bf16, atol=2e-2, rtol=2e-2), "mismatch vs bf16 ref (default)"
    assert jnp.allclose(out, ref_f32, atol=1e-1, rtol=1e-1), "mismatch vs f32 ref (default)"

    # Ragged final block (32-row tiles over 48 rows) + chunked hidden dim
    # (H=512 processed in 128-wide slabs) — exercises both boundary paths.
    out2 = jax.block_until_ready(
        feed_forward_module(x, params, tile_rows=32, h_chunk=128))
    assert jnp.allclose(out2, ref_bf16, atol=2e-2, rtol=2e-2), "mismatch (ragged/chunked)"

    print("KERNEL_OK")
</pallas_src>

<mosaic_0001>
module attributes {stable_mosaic.version = 11 : i64} {
  func.func @ffn_kernel(%arg0: i32, %arg1: memref<24x128xf32, #tpu.memory_space<vmem>>, %arg2: memref<1x128xf32, #tpu.memory_space<vmem>>, %arg3: memref<1x128xf32, #tpu.memory_space<vmem>>, %arg4: memref<128x512xbf16, #tpu.memory_space<vmem>>, %arg5: memref<1x512xf32, #tpu.memory_space<vmem>>, %arg6: memref<512x128xbf16, #tpu.memory_space<vmem>>, %arg7: memref<1x128xf32, #tpu.memory_space<vmem>>, %arg8: memref<24x128xf32, #tpu.memory_space<vmem>>) attributes {dimension_semantics = [#tpu.dimension_semantics<parallel>], iteration_bounds = array<i64: 2>, scalar_prefetch = 0 : i64, scratch_operands = 0 : i64, tpu.core_type = #tpu.core_type<tc>, window_params = [{transform_indices = @transform_0, window_bounds = array<i64: 24, 128>}, {pipeline_mode = #tpu.pipeline_mode<synchronous>, transform_indices = @transform_1, window_bounds = array<i64: 1, 128>}, {pipeline_mode = #tpu.pipeline_mode<synchronous>, transform_indices = @transform_2, window_bounds = array<i64: 1, 128>}, {pipeline_mode = #tpu.pipeline_mode<synchronous>, transform_indices = @transform_3, window_bounds = array<i64: 128, 512>}, {pipeline_mode = #tpu.pipeline_mode<synchronous>, transform_indices = @transform_4, window_bounds = array<i64: 1, 512>}, {pipeline_mode = #tpu.pipeline_mode<synchronous>, transform_indices = @transform_5, window_bounds = array<i64: 512, 128>}, {pipeline_mode = #tpu.pipeline_mode<synchronous>, transform_indices = @transform_6, window_bounds = array<i64: 1, 128>}, {transform_indices = @transform_7, window_bounds = array<i64: 24, 128>}]} {
    %c0 = arith.constant 0 : index
    %c0_0 = arith.constant 0 : index
    %0 = vector.load %arg1[%c0, %c0_0] : memref<24x128xf32, #tpu.memory_space<vmem>>, vector<24x128xf32>
    %cst = arith.constant dense<0.000000e+00> : vector<24xf32>
    %1 = vector.multi_reduction <add>, %0, %cst [1] : vector<24x128xf32> to vector<24xf32>
    %2 = vector.shape_cast %1 : vector<24xf32> to vector<24x1xf32>
    %cst_1 = arith.constant 1.280000e+02 : f32
    %3 = vector.broadcast %cst_1 : f32 to vector<24x1xf32>
    %4 = arith.divf %2, %3 : vector<24x1xf32>
    %5 = vector.broadcast %4 : vector<24x1xf32> to vector<24x128xf32>
    %6 = arith.subf %0, %5 : vector<24x128xf32>
    %7 = arith.mulf %6, %6 : vector<24x128xf32>
    %cst_2 = arith.constant dense<0.000000e+00> : vector<24xf32>
    %8 = vector.multi_reduction <add>, %7, %cst_2 [1] : vector<24x128xf32> to vector<24xf32>
    %9 = vector.shape_cast %8 : vector<24xf32> to vector<24x1xf32>
    %cst_3 = arith.constant 1.280000e+02 : f32
    %10 = vector.broadcast %cst_3 : f32 to vector<24x1xf32>
    %11 = arith.divf %9, %10 : vector<24x1xf32>
    %cst_4 = arith.constant 9.99999974E-6 : f32
    %12 = vector.broadcast %cst_4 : f32 to vector<24x1xf32>
    %13 = arith.addf %11, %12 : vector<24x1xf32>
    %14 = math.rsqrt %13 : vector<24x1xf32>
    %15 = vector.broadcast %14 : vector<24x1xf32> to vector<24x128xf32>
    %16 = arith.mulf %6, %15 : vector<24x128xf32>
    %c0_5 = arith.constant 0 : index
    %c0_6 = arith.constant 0 : index
    %17 = vector.load %arg2[%c0_5, %c0_6] : memref<1x128xf32, #tpu.memory_space<vmem>>, vector<1x128xf32>
    %18 = vector.broadcast %17 : vector<1x128xf32> to vector<24x128xf32>
    %19 = arith.mulf %16, %18 : vector<24x128xf32>
    %c0_7 = arith.constant 0 : index
    %c0_8 = arith.constant 0 : index
    %20 = vector.load %arg3[%c0_7, %c0_8] : memref<1x128xf32, #tpu.memory_space<vmem>>, vector<1x128xf32>
    %21 = vector.broadcast %20 : vector<1x128xf32> to vector<24x128xf32>
    %22 = arith.addf %19, %21 : vector<24x128xf32>
    %23 = arith.truncf %22 : vector<24x128xf32> to vector<24x128xbf16>
    %c0_9 = arith.constant 0 : index
    %c0_10 = arith.constant 0 : index
    %24 = vector.load %arg4[%c0_9, %c0_10] : memref<128x512xbf16, #tpu.memory_space<vmem>>, vector<128x512xbf16>
    %cst_11 = arith.constant dense<0.000000e+00> : vector<24x512xf32>
    %25 = tpu.matmul %23, %24, %cst_11 {dimension_numbers = #tpu.dot_dimension_numbers<[1], [0], [0], [1], [0, 0, 1, 1], [], []>} : vector<24x128xbf16>, vector<128x512xbf16>, vector<24x512xf32> -> vector<24x512xf32>
    %c0_12 = arith.constant 0 : index
    %c0_13 = arith.constant 0 : index
    %26 = vector.load %arg5[%c0_12, %c0_13] : memref<1x512xf32, #tpu.memory_space<vmem>>, vector<1x512xf32>
    %27 = vector.broadcast %26 : vector<1x512xf32> to vector<24x512xf32>
    %28 = arith.addf %25, %27 : vector<24x512xf32>
    %cst_14 = arith.constant 0.000000e+00 : f32
    %29 = vector.broadcast %cst_14 : f32 to vector<24x512xf32>
    %30 = arith.maximumf %28, %29 : vector<24x512xf32>
    %31 = arith.truncf %30 : vector<24x512xf32> to vector<24x512xbf16>
    %c0_15 = arith.constant 0 : index
    %c0_16 = arith.constant 0 : index
    %32 = vector.load %arg6[%c0_15, %c0_16] : memref<512x128xbf16, #tpu.memory_space<vmem>>, vector<512x128xbf16>
    %cst_17 = arith.constant dense<0.000000e+00> : vector<24x128xf32>
    %33 = tpu.matmul %31, %32, %cst_17 {dimension_numbers = #tpu.dot_dimension_numbers<[1], [0], [0], [1], [0, 0, 1, 1], [], []>} : vector<24x512xbf16>, vector<512x128xbf16>, vector<24x128xf32> -> vector<24x128xf32>
    %c0_18 = arith.constant 0 : index
    %c0_19 = arith.constant 0 : index
    %34 = vector.load %arg7[%c0_18, %c0_19] : memref<1x128xf32, #tpu.memory_space<vmem>>, vector<1x128xf32>
    %35 = vector.broadcast %34 : vector<1x128xf32> to vector<24x128xf32>
    %36 = arith.addf %33, %35 : vector<24x128xf32>
    %c0_20 = arith.constant 0 : index
    %c0_21 = arith.constant 0 : index
    %37 = vector.load %arg8[%c0_20, %c0_21] : memref<24x128xf32, #tpu.memory_space<vmem>>, vector<24x128xf32>
    tpu.vector_store %arg8[%c0_20, %c0_21], %36 {strides = array<i32>} : memref<24x128xf32, #tpu.memory_space<vmem>>, vector<24x128xf32>,
    return
  }
  func.func @transform_0(%arg0: i32) -> (i32, i32) {
    %c0_i32 = arith.constant 0 : i32
    %c0_i32_0 = arith.constant 0 : i32
    return %arg0, %c0_i32 : i32, i32
  }
  func.func @transform_1(%arg0: i32) -> (i32, i32) {
    %c0_i32 = arith.constant 0 : i32
    %c0_i32_0 = arith.constant 0 : i32
    %c0_i32_1 = arith.constant 0 : i32
    return %c0_i32, %c0_i32_0 : i32, i32
  }
  func.func @transform_2(%arg0: i32) -> (i32, i32) {
    %c0_i32 = arith.constant 0 : i32
    %c0_i32_0 = arith.constant 0 : i32
    %c0_i32_1 = arith.constant 0 : i32
    return %c0_i32, %c0_i32_0 : i32, i32
  }
  func.func @transform_3(%arg0: i32) -> (i32, i32) {
    %c0_i32 = arith.constant 0 : i32
    %c0_i32_0 = arith.constant 0 : i32
    %c0_i32_1 = arith.constant 0 : i32
    return %c0_i32, %c0_i32_0 : i32, i32
  }
  func.func @transform_4(%arg0: i32) -> (i32, i32) {
    %c0_i32 = arith.constant 0 : i32
    %c0_i32_0 = arith.constant 0 : i32
    %c0_i32_1 = arith.constant 0 : i32
    return %c0_i32, %c0_i32_0 : i32, i32
  }
  func.func @transform_5(%arg0: i32) -> (i32, i32) {
    %c0_i32 = arith.constant 0 : i32
    %c0_i32_0 = arith.constant 0 : i32
    %c0_i32_1 = arith.constant 0 : i32
    return %c0_i32, %c0_i32_0 : i32, i32
  }
  func.func @transform_6(%arg0: i32) -> (i32, i32) {
    %c0_i32 = arith.constant 0 : i32
    %c0_i32_0 = arith.constant 0 : i32
    %c0_i32_1 = arith.constant 0 : i32
    return %c0_i32, %c0_i32_0 : i32, i32
  }
  func.func @transform_7(%arg0: i32) -> (i32, i32) {
    %c0_i32 = arith.constant 0 : i32
    %c0_i32_0 = arith.constant 0 : i32
    return %arg0, %c0_i32 : i32, i32
  }
}

</mosaic_0001>

<llo_original>
// kernel: tpu_custom_call.1
$region0: #{tpu_custom_call.1}
  #allocation0 [shape = 'u32[]', space=smem, size = 0x4, offset = 0x4, fixed_abs, tag = 'smem constant byte address 0x4 - core index']
  #allocation1 [shape = 'u32[144,128]{1,0:T(1,128)}', space=vmem, size = 0x12000, scoped, tag = 'internal scratch']
  %s0 = inlined_call_operand.hbm [shape: f32[48,128], index: 0, kind: input, shape index: {}]
  %s1 = inlined_call_operand.vmem [shape: f32[1,128], index: 1, kind: input, shape index: {}]
  %s2 = inlined_call_operand.vmem [shape: f32[1,128], index: 2, kind: input, shape index: {}]
  %s3 = inlined_call_operand.hbm [shape: bf16[128,512], index: 3, kind: input, shape index: {}]
  %s4 = inlined_call_operand.vmem [shape: f32[1,512], index: 4, kind: input, shape index: {}]
  %s5 = inlined_call_operand.hbm [shape: bf16[512,128], index: 5, kind: input, shape index: {}]
  %s6 = inlined_call_operand.vmem [shape: f32[1,128], index: 6, kind: input, shape index: {}]
  %s7 = inlined_call_operand.hbm [shape: f32[48,128], index: 7, kind: output, shape index: {}]
  %s8 = sld [smem:[#allocation0]]
  $region73: #{tpu_custom_call.1} parent=0
    _
  %s10 = ssub.s32 1, %s8
  %s11 = scalar_select 0, %s10, %s8
  $region1: #{tpu_custom_call.1} parent=0
    #allocation2 [shape = 'u8[24576]{0}', space=vmem, size = 0x6000, scoped, tag = 'input window, operand 0']
    #allocation3 [shape = 's32[2]{0}', space=sflag, size = 0x8, scoped, tag = 'scoped memory for tpu_custom_call.1']
    #allocation4 [shape = 's32[2]{0}', space=sflag, size = 0x8, scoped, tag = 'scoped memory for tpu_custom_call.1']
    #allocation5 [shape = 'u8[131072]{0}', space=vmem, size = 0x20000, scoped, tag = 'input window, operand 3, single buffered']
    #allocation6 [shape = 's32[1]{0}', space=sflag, size = 0x4, scoped, tag = 'scoped memory for tpu_custom_call.1']
    #allocation7 [shape = 'u8[131072]{0}', space=vmem, size = 0x20000, scoped, tag = 'input window, operand 5, single buffered']
    #allocation8 [shape = 'u8[24576]{0}', space=vmem, size = 0x6000, scoped, tag = 'output window, operand 0']
    %12 = vsyncpa [#allocation3], 0
    %s13 = scalar_lea.sflag [#allocation3], 1
    %14 = vsyncpa %s13, 0
    %15 = vsyncpa [#allocation6], 0
    %16 = vsyncpa [#allocation4], 0
    %s17 = scalar_lea.sflag [#allocation4], 1
    %18 = vsyncpa %s17, 0
    loop: start=0, step=1, limit=4
    $region2: #{tpu_custom_call.1} parent=1 // loop_pre_header
      _
    $region3: #{tpu_custom_call.1} parent=1 // loop_header
      %s20 = sphi 0, %s24
      %p21 = scmp.ge.s32.totalorder %s20, 4
      %s30 = sphi 0, %s32
      %s33 = sphi 0, %s30
      %s34 = sphi 0, %s33
      %s50 = sphi 0, %s34
      %s54 = sphi 0, %s54
      %s56 = sphi 0, %s54
      %s57 = sphi 0, %s56
      %s71 = sphi 0, %s57
      %s75 = sphi 0, %s75
      %s77 = sphi 0, %s75
      %s78 = sphi 0, %s77
      %s92 = sphi 0, %s78
      %s96 = sphi 0, %s96
      %s98 = sphi 0, %s96
      %s99 = sphi 0, %s98
      %s113 = sphi 0, %s99
      %s117 = sphi 0, %s117
      %s119 = sphi 0, %s117
      %s120 = sphi 0, %s119
      %s134 = sphi 0, %s120
      %s138 = sphi 0, %s138
      %s140 = sphi 0, %s138
      %s141 = sphi 0, %s140
      %s155 = sphi 0, %s141
      %s159 = sphi 0, %s159
      %s161 = sphi 0, %s159
      %s162 = sphi 0, %s161
      %s176 = sphi 0, %s162
      %s182 = sphi 0, %s184
      %s185 = sphi 0, %s182
      %s186 = sphi 0, %s185
      %s202 = sphi 0, %s186
    $region4: #{tpu_custom_call.1} parent=1 // loop_header_branch
      %23 = sbr.rel (%p21) target = $region8
    $region5: #{tpu_custom_call.1} parent=1 // loop_body
      %s25 = ssub.s32 %s20, 1
      %s26 = ssub.s32 %s20, 2
      %s27 = sadd.s32 %s20, 1
      %s28 = ssub.s32 %s20, %s27
      %p29 = scmp.eq.s32.totalorder %s28, 0
      %s31 = sadd.s32 %s30, 1
      %s32 = scalar_select %p29, %s30, %s31
      %p35 = pneg %p29
      %p36 = scmp.eq.s32.totalorder %s20, 1
      %p37 = por %p35, %p36
      %p38 = scmp.ne.s32.totalorder %s30, %s33
      %p39 = scmp.eq.s32.totalorder %s20, 0
      %p40 = por %p38, %p39
      %p41 = scmp.ne.s32.totalorder %s30, %s33
      %p42 = scmp.eq.s32.totalorder %s25, 1
      %p43 = por %p41, %p42
      %p44 = scmp.ne.s32.totalorder %s33, %s34
      %p45 = scmp.eq.s32.totalorder %s25, 0
      %p46 = por %p44, %p45
      %p47 = scmp.ne.s32.totalorder %s33, %s34
      %p48 = scmp.eq.s32.totalorder %s26, 1
      %p49 = por %p47, %p48
      %p51 = scmp.ne.s32.totalorder %s34, %s50
      %p52 = scmp.eq.s32.totalorder %s26, 0
      %p53 = por %p51, %p52
      %s55 = sadd.s32 %s54, 1
      %p58 = scmp.eq.s32.totalorder %s20, 1
      %p59 = scmp.ne.s32.totalorder %s54, %s56
      %p60 = scmp.eq.s32.totalorder %s20, 0
      %p61 = por %p59, %p60
      %p62 = scmp.ne.s32.totalorder %s54, %s56
      %p63 = scmp.eq.s32.totalorder %s25, 1
      %p64 = por %p62, %p63
      %p65 = scmp.ne.s32.totalorder %s56, %s57
      %p66 = scmp.eq.s32.totalorder %s25, 0
      %p67 = por %p65, %p66
      %p68 = scmp.ne.s32.totalorder %s56, %s57
      %p69 = scmp.eq.s32.totalorder %s26, 1
      %p70 = por %p68, %p69
      %p72 = scmp.ne.s32.totalorder %s57, %s71
      %p73 = scmp.eq.s32.totalorder %s26, 0
      %p74 = por %p72, %p73
      %s76 = sadd.s32 %s75, 1
      %p79 = scmp.eq.s32.totalorder %s20, 1
      %p80 = scmp.ne.s32.totalorder %s75, %s77
      %p81 = scmp.eq.s32.totalorder %s20, 0
      %p82 = por %p80, %p81
      %p83 = scmp.ne.s32.totalorder %s75, %s77
      %p84 = scmp.eq.s32.totalorder %s25, 1
      %p85 = por %p83, %p84
      %p86 = scmp.ne.s32.totalorder %s77, %s78
      %p87 = scmp.eq.s32.totalorder %s25, 0
      %p88 = por %p86, %p87
      %p89 = scmp.ne.s32.totalorder %s77, %s78
      %p90 = scmp.eq.s32.totalorder %s26, 1
      %p91 = por %p89, %p90
      %p93 = scmp.ne.s32.totalorder %s78, %s92
      %p94 = scmp.eq.s32.totalorder %s26, 0
      %p95 = por %p93, %p94
      %s97 = sadd.s32 %s96, 1
      %p100 = scmp.eq.s32.totalorder %s20, 1
      %p101 = scmp.ne.s32.totalorder %s96, %s98
      %p102 = scmp.eq.s32.totalorder %s20, 0
      %p103 = por %p101, %p102
      %p104 = scmp.ne.s32.totalorder %s96, %s98
      %p105 = scmp.eq.s32.totalorder %s25, 1
      %p106 = por %p104, %p105
      %p107 = scmp.ne.s32.totalorder %s98, %s99
      %p108 = scmp.eq.s32.totalorder %s25, 0
      %p109 = por %p107, %p108
      %p110 = scmp.ne.s32.totalorder %s98, %s99
      %p111 = scmp.eq.s32.totalorder %s26, 1
      %p112 = por %p110, %p111
      %p114 = scmp.ne.s32.totalorder %s99, %s113
      %p115 = scmp.eq.s32.totalorder %s26, 0
      %p116 = por %p114, %p115
      %s118 = sadd.s32 %s117, 1
      %p121 = scmp.eq.s32.totalorder %s20, 1
      %p122 = scmp.ne.s32.totalorder %s117, %s119
      %p123 = scmp.eq.s32.totalorder %s20, 0
      %p124 = por %p122, %p123
      %p125 = scmp.ne.s32.totalorder %s117, %s119
      %p126 = scmp.eq.s32.totalorder %s25, 1
      %p127 = por %p125, %p126
      %p128 = scmp.ne.s32.totalorder %s119, %s120
      %p129 = scmp.eq.s32.totalorder %s25, 0
      %p130 = por %p128, %p129
      %p131 = scmp.ne.s32.totalorder %s119, %s120
      %p132 = scmp.eq.s32.totalorder %s26, 1
      %p133 = por %p131, %p132
      %p135 = scmp.ne.s32.totalorder %s120, %s134
      %p136 = scmp.eq.s32.totalorder %s26, 0
      %p137 = por %p135, %p136
      %s139 = sadd.s32 %s138, 1
      %p142 = scmp.eq.s32.totalorder %s20, 1
      %p143 = scmp.ne.s32.totalorder %s138, %s140
      %p144 = scmp.eq.s32.totalorder %s20, 0
      %p145 = por %p143, %p144
      %p146 = scmp.ne.s32.totalorder %s138, %s140
      %p147 = scmp.eq.s32.totalorder %s25, 1
      %p148 = por %p146, %p147
      %p149 = scmp.ne.s32.totalorder %s140, %s141
      %p150 = scmp.eq.s32.totalorder %s25, 0
      %p151 = por %p149, %p150
      %p152 = scmp.ne.s32.totalorder %s140, %s141
      %p153 = scmp.eq.s32.totalorder %s26, 1
      %p154 = por %p152, %p153
      %p156 = scmp.ne.s32.totalorder %s141, %s155
      %p157 = scmp.eq.s32.totalorder %s26, 0
      %p158 = por %p156, %p157
      %s160 = sadd.s32 %s159, 1
      %p163 = scmp.eq.s32.totalorder %s20, 1
      %p164 = scmp.ne.s32.totalorder %s159, %s161
      %p165 = scmp.eq.s32.totalorder %s20, 0
      %p166 = por %p164, %p165
      %p167 = scmp.ne.s32.totalorder %s159, %s161
      %p168 = scmp.eq.s32.totalorder %s25, 1
      %p169 = por %p167, %p168
      %p170 = scmp.ne.s32.totalorder %s161, %s162
      %p171 = scmp.eq.s32.totalorder %s25, 0
      %p172 = por %p170, %p171
      %p173 = scmp.ne.s32.totalorder %s161, %s162
      %p174 = scmp.eq.s32.totalorder %s26, 1
      %p175 = por %p173, %p174
      %p177 = scmp.ne.s32.totalorder %s162, %s176
      %p178 = scmp.eq.s32.totalorder %s26, 0
      %p179 = por %p177, %p178
      %s180 = ssub.s32 %s20, %s27
      %p181 = scmp.eq.s32.totalorder %s180, 0
      %s183 = sadd.s32 %s182, 1
      %s184 = scalar_select %p181, %s182, %s183
      %p187 = pneg %p181
      %p188 = scmp.eq.s32.totalorder %s20, 1
      %p189 = por %p187, %p188
      %p190 = scmp.ne.s32.totalorder %s182, %s185
      %p191 = scmp.eq.s32.totalorder %s20, 0
      %p192 = por %p190, %p191
      %p193 = scmp.ne.s32.totalorder %s182, %s185
      %p194 = scmp.eq.s32.totalorder %s25, 1
      %p195 = por %p193, %p194
      %p196 = scmp.ne.s32.totalorder %s185, %s186
      %p197 = scmp.eq.s32.totalorder %s25, 0
      %p198 = por %p196, %p197
      %p199 = scmp.ne.s32.totalorder %s185, %s186
      %p200 = scmp.eq.s32.totalorder %s26, 1
      %p201 = por %p199, %p200
      %p203 = scmp.ne.s32.totalorder %s186, %s202
      %p204 = scmp.eq.s32.totalorder %s26, 0
      %p205 = por %p203, %p204
      %p206 = scmp.le.s32.totalorder 1, %s20
      %p207 = scmp.lt.s32.totalorder %s20, 3
      %p208 = pnand %p206, %p207
      %p209 = pneg %p208
      // Predicated region
      $region9: #{tpu_custom_call.1} parent=5 // pred_check
        _
      $region10: #{tpu_custom_call.1} parent=5 // pred_check_branch
        %211 = sbr.rel (%p208) target = $region12
      $region11: #{tpu_custom_call.1} parent=5 // pred_region
        %s212 = ssub.s32 %s20, 1
        // Predicated region
        $region13: #{tpu_custom_call.1} parent=11 // pred_check
          %p213 = pneg %p67
        $region14: #{tpu_custom_call.1} parent=11 // pred_check_branch
          %215 = sbr.rel (%p213) target = $region16
        $region15: #{tpu_custom_call.1} parent=11 // pred_region
          _
        $region16: #{tpu_custom_call.1} parent=11 // pred_fallthru
          _
        // Predicated region
        $region17: #{tpu_custom_call.1} parent=11 // pred_check
          %p216 = pneg %p88
        $region18: #{tpu_custom_call.1} parent=11 // pred_check_branch
          %218 = sbr.rel (%p216) target = $region20
        $region19: #{tpu_custom_call.1} parent=11 // pred_region
          _
        $region20: #{tpu_custom_call.1} parent=11 // pred_fallthru
          _
        // Predicated region
        $region21: #{tpu_custom_call.1} parent=11 // pred_check
          %p219 = pneg %p109
        $region22: #{tpu_custom_call.1} parent=11 // pred_check_branch
          %221 = sbr.rel (%p219) target = $region24
        $region23: #{tpu_custom_call.1} parent=11 // pred_region
          %s223 = ssub.s32 4096, 4096
          %224 = vsyncadd [#allocation6], %s223
          %s225 = sshll.u32 [#allocation5], 4
          %s226 = int_to_ptr.vmem [resolvable:$true] %s225
          %231 = dma.hbm_to_vmem [thread:$0]  %s3, 4096, %s226, [#allocation6], 256, 256, 16
        $region24: #{tpu_custom_call.1} parent=11 // pred_fallthru
          _
        // Predicated region
        $region25: #{tpu_custom_call.1} parent=11 // pred_check
          %p232 = pneg %p130
        $region26: #{tpu_custom_call.1} parent=11 // pred_check_branch
          %234 = sbr.rel (%p232) target = $region28
        $region27: #{tpu_custom_call.1} parent=11 // pred_region
          _
        $region28: #{tpu_custom_call.1} parent=11 // pred_fallthru
          _
        // Predicated region
        $region29: #{tpu_custom_call.1} parent=11 // pred_check
          %p235 = pneg %p151
        $region30: #{tpu_custom_call.1} parent=11 // pred_check_branch
          %237 = sbr.rel (%p235) target = $region32
        $region31: #{tpu_custom_call.1} parent=11 // pred_region
          %s239 = ssub.s32 4096, 4096
          %240 = vsyncadd [#allocation6], %s239
          %s241 = sshll.u32 [#allocation7], 4
          %s242 = int_to_ptr.vmem [resolvable:$true] %s241
          %247 = dma.hbm_to_vmem [thread:$0]  %s5, 4096, %s242, [#allocation6], 64, 64, 4
        $region32: #{tpu_custom_call.1} parent=11 // pred_fallthru
          _
        // Predicated region
        $region33: #{tpu_custom_call.1} parent=11 // pred_check
          %p248 = pneg %p172
        $region34: #{tpu_custom_call.1} parent=11 // pred_check_branch
          %250 = sbr.rel (%p248) target = $region36
        $region35: #{tpu_custom_call.1} parent=11 // pred_region
          _
        $region36: #{tpu_custom_call.1} parent=11 // pred_fallthru
          _
      $region12: #{tpu_custom_call.1} parent=5 // pred_fallthru
        _
      %p251 = scmp.lt.s32.totalorder %s20, 2
      // Predicated region
      $region37: #{tpu_custom_call.1} parent=5 // pred_check
        %p252 = pneg %p251
      $region38: #{tpu_custom_call.1} parent=5 // pred_check_branch
        %254 = sbr.rel (%p252) target = $region40
      $region39: #{tpu_custom_call.1} parent=5 // pred_region
        // Predicated region
        $region41: #{tpu_custom_call.1} parent=39 // pred_check
          %p255 = pneg %p40
        $region42: #{tpu_custom_call.1} parent=39 // pred_check_branch
          %257 = sbr.rel (%p255) target = $region44
        $region43: #{tpu_custom_call.1} parent=39 // pred_region
          %s258 = sand.u32 %s30, 1
          %s259 = scalar_lea.sflag [#allocation3], %s258
          %s260 = sand.u32 %s30, 1
          %s261 = smul.addr %s260, 24
          %s262 = scalar_lea.vmem [#allocation2], %s261
          %s263 = smul.u32 3, %s20
          %s265 = ssub.s32 384, 384
          %266 = vsyncadd %s259, %s265
          %s267 = smul.addr %s263, 128
          %s268 = scalar_lea.hbm %s0, %s267
          %s269 = sshll.u32 %s262, 4
          %s270 = int_to_ptr.vmem [resolvable:$true] %s269
          %275 = dma.hbm_to_vmem [thread:$0]  %s268, 384, %s270, %s259, 128, 128, 8
        $region44: #{tpu_custom_call.1} parent=39 // pred_fallthru
          _
      $region40: #{tpu_custom_call.1} parent=5 // pred_fallthru
        _
      %p276 = scmp.le.s32.totalorder 1, %s20
      %p277 = scmp.lt.s32.totalorder %s20, 3
      %p278 = pnand %p276, %p277
      %p279 = pneg %p278
      // Predicated region
      $region45: #{tpu_custom_call.1} parent=5 // pred_check
        _
      $region46: #{tpu_custom_call.1} parent=5 // pred_check_branch
        %281 = sbr.rel (%p278) target = $region48
      $region47: #{tpu_custom_call.1} parent=5 // pred_region
        %s282 = ssub.s32 %s20, 1
        %s283 = sand.u32 %s33, 1
        %s284 = scalar_lea.sflag [#allocation3], %s283
        %s285 = sand.u32 %s33, 1
        %s286 = smul.addr %s285, 24
        %s287 = scalar_lea.vmem [#allocation2], %s286
        // Predicated region
        $region49: #{tpu_custom_call.1} parent=47 // pred_check
          %p288 = pneg %p46
        $region50: #{tpu_custom_call.1} parent=47 // pred_check_branch
          %290 = sbr.rel (%p288) target = $region52
        $region51: #{tpu_custom_call.1} parent=47 // pred_region
          %291 = dma.done %s284, 384
        $region52: #{tpu_custom_call.1} parent=47 // pred_fallthru
          _
        // Predicated region
        $region53: #{tpu_custom_call.1} parent=47 // pred_check
          %p292 = pneg %p109
        $region54: #{tpu_custom_call.1} parent=47 // pred_check_branch
          %294 = sbr.rel (%p292) target = $region56
        $region55: #{tpu_custom_call.1} parent=47 // pred_region
          %295 = dma.done [#allocation6], 4096
        $region56: #{tpu_custom_call.1} parent=47 // pred_fallthru
          _
        // Predicated region
        $region57: #{tpu_custom_call.1} parent=47 // pred_check
          %p296 = pneg %p151
        $region58: #{tpu_custom_call.1} parent=47 // pred_check_branch
          %298 = sbr.rel (%p296) target = $region60
        $region59: #{tpu_custom_call.1} parent=47 // pred_region
          %299 = dma.done [#allocation6], 4096
        $region60: #{tpu_custom_call.1} parent=47 // pred_fallthru
          _
        %s300 = sand.u32 %s33, 1
        %s301 = scalar_lea.sflag [#allocation3], %s300
        %s302 = sand.u32 %s33, 1
        %s303 = smul.addr %s302, 24
        %s304 = scalar_lea.vmem [#allocation2], %s303
        %p305 = pneg %p46
        %p306 = pneg %p43
        %p307 = pneg %p67
        %p308 = pneg %p64
        %p309 = pneg %p88
        %p310 = pneg %p85
        %p311 = pneg %p109
        %p312 = pneg %p106
        %p313 = pneg %p130
        %p314 = pneg %p127
        %p315 = pneg %p151
        %p316 = pneg %p148
        %p317 = pneg %p172
        %p318 = pneg %p169
        %p319 = pneg %p198
        %p320 = pneg %p195
        %s321 = sand.u32 %s185, 1
        %s322 = scalar_lea.sflag [#allocation4], %s321
        %s323 = sand.u32 %s185, 1
        %s324 = smul.addr %s323, 24
        %s325 = scalar_lea.vmem [#allocation8], %s324
        %s326 = smul.u32 3, %s25
        %s327 = smul.u32 3, %s25
        %v329 = vld [vmem:[%s287] sm:$0xff]
        %v330 = vld [vmem:[%s287 + $0x8] sm:$0xff]
        %v331 = vld [vmem:[%s287 + $0x10] sm:$0xff]
        %332 = vadd.xlane.f32.xlu0 %v329
        %v333 = vpop.xlane.xlu0 %332
        %334 = vadd.xlane.f32.xlu0 %v330
        %v335 = vpop.xlane.xlu0 %334
        %336 = vadd.xlane.f32.xlu0 %v331
        %v337 = vpop.xlane.xlu0 %336
        %v338 = vrcp.pop 128.0
        %v339 = vmul.f32 %v333, %v338
        %v340 = vmul.f32 %v335, %v338
        %v341 = vmul.f32 %v337, %v338
        %v342 = vsub.f32 %v329, %v339
        %v343 = vsub.f32 %v330, %v340
        %v344 = vsub.f32 %v331, %v341
        %v345 = vmul.f32 %v342, %v342
        %v346 = vmul.f32 %v343, %v343
        %v347 = vmul.f32 %v344, %v344
        %348 = vadd.xlane.f32.xlu0 %v345
        %v349 = vpop.xlane.xlu0 %348
        %350 = vadd.xlane.f32.xlu0 %v346
        %v351 = vpop.xlane.xlu0 %350
        %352 = vadd.xlane.f32.xlu0 %v347
        %v353 = vpop.xlane.xlu0 %352
        %v354 = vmul.f32 %v349, %v338
        %v355 = vmul.f32 %v351, %v338
        %v356 = vmul.f32 %v353, %v338
        %v357 = vadd.f32 %v354, 1e-05
        %v358 = vadd.f32 %v355, 1e-05
        %v359 = vadd.f32 %v356, 1e-05
        %v360 = vrsqrt.pop %v357
        %v361 = vrsqrt.pop %v358
        %v362 = vrsqrt.pop %v359
        %v363 = vmul.f32 %v342, %v360
        %v364 = vmul.f32 %v343, %v361
        %v365 = vmul.f32 %v344, %v362
        %v366 = vld [vmem:[%s1] sm:$0x1]
        %v368 = vlaneseq
        %v369 = vshrl.u32 %v368, 7
        %v370 = vsub.s32 0, %v369
        %v371 = vrot.slane %v366, %v370
        %v373 = vmul.f32 %v363, %v371
        %v374 = vmul.f32 %v364, %v371
        %v375 = vmul.f32 %v365, %v371
        %v376 = vld [vmem:[%s2] sm:$0x1]
        %v378 = vlaneseq
        %v379 = vshrl.u32 %v378, 7
        %v380 = vsub.s32 0, %v379
        %v381 = vrot.slane %v376, %v380
        %v383 = vadd.f32 %v373, %v381
        %v384 = vadd.f32 %v374, %v381
        %v385 = vadd.f32 %v375, %v381
        %v386 = vpack.c.bf16 %v384, %v383
        %v387 = vpack.c.bf16 %v385, %v385
        %v388 = vld [vmem:[#allocation5] sm:$0xff]
        %v389 = vld [vmem:[#allocation5 + $0x8] sm:$0xff]
        %v390 = vld [vmem:[#allocation5 + $0x10] sm:$0xff]
        %v391 = vld [vmem:[#allocation5 + $0x18] sm:$0xff]
        %v392 = vld [vmem:[#allocation5 + $0x20] sm:$0xff]
        %v393 = vld [vmem:[#allocation5 + $0x28] sm:$0xff]
        %v394 = vld [vmem:[#allocation5 + $0x30] sm:$0xff]
        %v395 = vld [vmem:[#allocation5 + $0x38] sm:$0xff]
        %v396 = vld [vmem:[#allocation5 + $0x40] sm:$0xff]
        %v397 = vld [vmem:[#allocation5 + $0x48] sm:$0xff]
        %v398 = vld [vmem:[#allocation5 + $0x50] sm:$0xff]
        %v399 = vld [vmem:[#allocation5 + $0x58] sm:$0xff]
        %v400 = vld [vmem:[#allocation5 + $0x60] sm:$0xff]
        %v401 = vld [vmem:[#allocation5 + $0x68] sm:$0xff]
        %v402 = vld [vmem:[#allocation5 + $0x70] sm:$0xff]
        %v403 = vld [vmem:[#allocation5 + $0x78] sm:$0xff]
        %v404 = vld [vmem:[#allocation5 + $0x80] sm:$0xff]
        %v405 = vld [vmem:[#allocation5 + $0x88] sm:$0xff]
        %v406 = vld [vmem:[#allocation5 + $0x90] sm:$0xff]
        %v407 = vld [vmem:[#allocation5 + $0x98] sm:$0xff]
        %v408 = vld [vmem:[#allocation5 + $0xa0] sm:$0xff]
        %v409 = vld [vmem:[#allocation5 + $0xa8] sm:$0xff]
        %v410 = vld [vmem:[#allocation5 + $0xb0] sm:$0xff]
        %v411 = vld [vmem:[#allocation5 + $0xb8] sm:$0xff]
        %v412 = vld [vmem:[#allocation5 + $0xc0] sm:$0xff]
        %v413 = vld [vmem:[#allocation5 + $0xc8] sm:$0xff]
        %v414 = vld [vmem:[#allocation5 + $0xd0] sm:$0xff]
        %v415 = vld [vmem:[#allocation5 + $0xd8] sm:$0xff]
        %v416 = vld [vmem:[#allocation5 + $0xe0] sm:$0xff]
        %v417 = vld [vmem:[#allocation5 + $0xe8] sm:$0xff]
        %v418 = vld [vmem:[#allocation5 + $0xf0] sm:$0xff]
        %v419 = vld [vmem:[#allocation5 + $0xf8] sm:$0xff]
        %v420 = vld [vmem:[%s4] sm:$0xf]
        %v422 = vlaneseq
        %v423 = vshrl.u32 %v422, 7
        %v424 = vsub.s32 0, %v423
        %v425 = vrot.slane %v420, %v424
        %v426 = vlaneseq
        %v427 = vshrl.u32 %v426, 7
        %v428 = vsub.s32 1, %v427
        %v429 = vrot.slane %v420, %v428
        %v430 = vlaneseq
        %v431 = vshrl.u32 %v430, 7
        %v432 = vsub.s32 2, %v431
        %v433 = vrot.slane %v420, %v432
        %v434 = vlaneseq
        %v435 = vshrl.u32 %v434, 7
        %v436 = vsub.s32 3, %v435
        %v437 = vrot.slane %v420, %v436
        %v474 = vunpack.c.l.b16 %v388
        %v475 = vunpack.c.h.b16 %v388
        %v476 = vunpack.c.l.b16 %v389
        %v477 = vunpack.c.h.b16 %v389
        %v478 = vunpack.c.l.b16 %v390
        %v479 = vunpack.c.h.b16 %v390
        %v480 = vunpack.c.l.b16 %v391
        %v481 = vunpack.c.h.b16 %v391
        %v482 = vunpack.c.l.b16 %v392
        %v483 = vunpack.c.h.b16 %v392
        %v484 = vunpack.c.l.b16 %v393
        %v485 = vunpack.c.h.b16 %v393
        %v486 = vunpack.c.l.b16 %v394
        %v487 = vunpack.c.h.b16 %v394
        %v488 = vunpack.c.l.b16 %v395
        %v489 = vunpack.c.h.b16 %v395
        %v490 = vunpack.c.l.b16 %v396
        %v491 = vunpack.c.h.b16 %v396
        %v492 = vunpack.c.l.b16 %v397
        %v493 = vunpack.c.h.b16 %v397
        %v494 = vunpack.c.l.b16 %v398
        %v495 = vunpack.c.h.b16 %v398
        %v496 = vunpack.c.l.b16 %v399
        %v497 = vunpack.c.h.b16 %v399
        %v498 = vunpack.c.l.b16 %v400
        %v499 = vunpack.c.h.b16 %v400
        %v500 = vunpack.c.l.b16 %v401
        %v501 = vunpack.c.h.b16 %v401
        %v502 = vunpack.c.l.b16 %v402
        %v503 = vunpack.c.h.b16 %v402
        %v504 = vunpack.c.l.b16 %v403
        %v505 = vunpack.c.h.b16 %v403
        %v506 = vunpack.c.l.b16 %v404
        %v507 = vunpack.c.h.b16 %v404
        %v508 = vunpack.c.l.b16 %v405
        %v509 = vunpack.c.h.b16 %v405
        %v510 = vunpack.c.l.b16 %v406
        %v511 = vunpack.c.h.b16 %v406
        %v512 = vunpack.c.l.b16 %v407
        %v513 = vunpack.c.h.b16 %v407
        %v514 = vunpack.c.l.b16 %v408
        %v515 = vunpack.c.h.b16 %v408
        %v516 = vunpack.c.l.b16 %v409
        %v517 = vunpack.c.h.b16 %v409
        %v518 = vunpack.c.l.b16 %v410
        %v519 = vunpack.c.h.b16 %v410
        %v520 = vunpack.c.l.b16 %v411
        %v521 = vunpack.c.h.b16 %v411
        %v522 = vunpack.c.l.b16 %v412
        %v523 = vunpack.c.h.b16 %v412
        %v524 = vunpack.c.l.b16 %v413
        %v525 = vunpack.c.h.b16 %v413
        %v526 = vunpack.c.l.b16 %v414
        %v527 = vunpack.c.h.b16 %v414
        %v528 = vunpack.c.l.b16 %v415
        %v529 = vunpack.c.h.b16 %v415
        %v530 = vunpack.c.l.b16 %v416
        %v531 = vunpack.c.h.b16 %v416
        %v532 = vunpack.c.l.b16 %v417
        %v533 = vunpack.c.h.b16 %v417
        %v534 = vunpack.c.l.b16 %v418
        %v535 = vunpack.c.h.b16 %v418
        %v536 = vunpack.c.l.b16 %v419
        %v537 = vunpack.c.h.b16 %v419
        %v538 = vpack.c.b16 %v478, %v474
        %v539 = vpack.c.b16 %v479, %v475
        %v540 = vpack.c.b16 %v480, %v476
        %v541 = vpack.c.b16 %v481, %v477
        %v542 = vpack.c.b16 %v486, %v482
        %v543 = vpack.c.b16 %v487, %v483
        %v544 = vpack.c.b16 %v488, %v484
        %v545 = vpack.c.b16 %v489, %v485
        %v546 = vpack.c.b16 %v494, %v490
        %v547 = vpack.c.b16 %v495, %v491
        %v548 = vpack.c.b16 %v496, %v492
        %v549 = vpack.c.b16 %v497, %v493
        %v550 = vpack.c.b16 %v502, %v498
        %v551 = vpack.c.b16 %v503, %v499
        %v552 = vpack.c.b16 %v504, %v500
        %v553 = vpack.c.b16 %v505, %v501
        %v554 = vpack.c.b16 %v510, %v506
        %v555 = vpack.c.b16 %v511, %v507
        %v556 = vpack.c.b16 %v512, %v508
        %v557 = vpack.c.b16 %v513, %v509
        %v558 = vpack.c.b16 %v518, %v514
        %v559 = vpack.c.b16 %v519, %v515
        %v560 = vpack.c.b16 %v520, %v516
        %v561 = vpack.c.b16 %v521, %v517
        %v562 = vpack.c.b16 %v526, %v522
        %v563 = vpack.c.b16 %v527, %v523
        %v564 = vpack.c.b16 %v528, %v524
        %v565 = vpack.c.b16 %v529, %v525
        %v566 = vpack.c.b16 %v534, %v530
        %v567 = vpack.c.b16 %v535, %v531
        %v568 = vpack.c.b16 %v536, %v532
        %v569 = vpack.c.b16 %v537, %v533
        %602 = vmatprep.subr.bf16.mxu0 %v567
        %603 = vmatpush1.bf16.msra.mxu0 %v566
        %604 = vmatprep.subr.bf16.mxu0 %v563
        %605 = vmatpush1.bf16.msra.mxu0 %v562
        %606 = vmatprep.subr.bf16.mxu0 %v559
        %607 = vmatpush1.bf16.msra.mxu0 %v558
        %608 = vmatprep.subr.bf16.mxu0 %v555
        %609 = vmatpush1.bf16.msra.mxu0 %v554
        %610 = vmatprep.subr.bf16.mxu0 %v551
        %611 = vmatpush1.bf16.msra.mxu0 %v550
        %612 = vmatprep.subr.bf16.mxu0 %v547
        %613 = vmatpush1.bf16.msra.mxu0 %v546
        %614 = vmatprep.subr.bf16.mxu0 %v543
        %615 = vmatpush1.bf16.msra.mxu0 %v542
        %616 = vmatprep.subr.bf16.mxu0 %v539
        %617 = vmatpush1.bf16.msra.mxu0 %v538
        %618 = vmatprep.subr.bf16.mxu0 0
        %619 = vmatpush2.bf16.msra.mxu0 0
        %620 = vmatprep.subr.bf16.mxu0 0
        %621 = vmatpush2.bf16.msra.mxu0 0
        %622 = vmatprep.subr.bf16.mxu0 0
        %623 = vmatpush2.bf16.msra.mxu0 0
        %624 = vmatprep.subr.bf16.mxu0 0
        %625 = vmatpush2.bf16.msra.mxu0 0
        %626 = vmatprep.subr.bf16.mxu0 0
        %627 = vmatpush2.bf16.msra.mxu0 0
        %628 = vmatprep.subr.bf16.mxu0 0
        %629 = vmatpush2.bf16.msra.mxu0 0
        %630 = vmatprep.subr.bf16.mxu0 0
        %631 = vmatpush2.bf16.msra.mxu0 0
        %632 = vmatprep.subr.bf16.mxu0 0
        %633 = vmatpush2.bf16.msra.mxu0 0
        %634 = vmatprep.mubr.bf16.mxu0 0
        %635 = vmatmul.mubr.bf16.gmra.mxu0 %v386
        %v636 = vpop.f32.mrf.mxu0
        %v637 = vadd.f32 %v425, %v636
        %v638 = vpop.f32.mrf.mxu0
        %v639 = vadd.f32 %v429, %v638
        %v640 = vpop.f32.mrf.mxu0
        %v641 = vadd.f32 %v425, %v640
        %v642 = vpop.f32.mrf.mxu0
        %v643 = vadd.f32 %v429, %v642
        %644 = vmatprep.mubr.bf16.mxu0 0
        %645 = vmatmul.mubr.bf16.gmra.mxu0 %v387
        %v646 = vpop.f32.mrf.mxu0
        %v647 = vadd.f32 %v425, %v646
        %v648 = vpop.f32.mrf.mxu0
        %v649 = vadd.f32 %v429, %v648
        %v650 = vpop.f32.mrf.mxu0
        %v651 = vpop.f32.mrf.mxu0
        %652 = vdwg.mxu0
        %653 = vmatprep.subr.bf16.mxu0 %v569
        %654 = vmatpush1.bf16.msra.mxu0 %v568
        %655 = vmatprep.subr.bf16.mxu0 %v565
        %656 = vmatpush1.bf16.msra.mxu0 %v564
        %657 = vmatprep.subr.bf16.mxu0 %v561
        %658 = vmatpush1.bf16.msra.mxu0 %v560
        %659 = vmatprep.subr.bf16.mxu0 %v557
        %660 = vmatpush1.bf16.msra.mxu0 %v556
        %661 = vmatprep.subr.bf16.mxu0 %v553
        %662 = vmatpush1.bf16.msra.mxu0 %v552
        %663 = vmatprep.subr.bf16.mxu0 %v549
        %664 = vmatpush1.bf16.msra.mxu0 %v548
        %665 = vmatprep.subr.bf16.mxu0 %v545
        %666 = vmatpush1.bf16.msra.mxu0 %v544
        %667 = vmatprep.subr.bf16.mxu0 %v541
        %668 = vmatpush1.bf16.msra.mxu0 %v540
        %669 = vmatprep.subr.bf16.mxu0 0
        %670 = vmatpush2.bf16.msra.mxu0 0
        %671 = vmatprep.subr.bf16.mxu0 0
        %672 = vmatpush2.bf16.msra.mxu0 0
        %673 = vmatprep.subr.bf16.mxu0 0
        %674 = vmatpush2.bf16.msra.mxu0 0
        %675 = vmatprep.subr.bf16.mxu0 0
        %676 = vmatpush2.bf16.msra.mxu0 0
        %677 = vmatprep.subr.bf16.mxu0 0
        %678 = vmatpush2.bf16.msra.mxu0 0
        %679 = vmatprep.subr.bf16.mxu0 0
        %680 = vmatpush2.bf16.msra.mxu0 0
        %681 = vmatprep.subr.bf16.mxu0 0
        %682 = vmatpush2.bf16.msra.mxu0 0
        %683 = vmatprep.subr.bf16.mxu0 0
        %684 = vmatpush2.bf16.msra.mxu0 0
        %685 = vmatprep.mubr.bf16.mxu0 0
        %686 = vmatmul.mubr.bf16.gmra.mxu0 %v386
        %v687 = vpop.f32.mrf.mxu0
        %v688 = vadd.f32 %v433, %v687
        %v689 = vpop.f32.mrf.mxu0
        %v690 = vadd.f32 %v437, %v689
        %v691 = vpop.f32.mrf.mxu0
        %v692 = vadd.f32 %v433, %v691
        %v693 = vpop.f32.mrf.mxu0
        %v694 = vadd.f32 %v437, %v693
        %695 = vmatprep.mubr.bf16.mxu0 0
        %696 = vmatmul.mubr.bf16.gmra.mxu0 %v387
        %v697 = vpop.f32.mrf.mxu0
        %v698 = vadd.f32 %v433, %v697
        %v699 = vpop.f32.mrf.mxu0
        %v700 = vadd.f32 %v437, %v699
        %v701 = vpop.f32.mrf.mxu0
        %v702 = vpop.f32.mrf.mxu0
        %703 = vdwg.mxu0
        %v704 = vmax.f32 %v637, 0.0
        %v705 = vmax.f32 %v639, 0.0
        %v706 = vmax.f32 %v688, 0.0
        %v707 = vmax.f32 %v690, 0.0
        %v708 = vmax.f32 %v641, 0.0
        %v709 = vmax.f32 %v643, 0.0
        %v710 = vmax.f32 %v692, 0.0
        %v711 = vmax.f32 %v694, 0.0
        %v712 = vmax.f32 %v647, 0.0
        %v713 = vmax.f32 %v649, 0.0
        %v714 = vmax.f32 %v698, 0.0
        %v715 = vmax.f32 %v700, 0.0
        %v716 = vpack.c.bf16 %v708, %v704
        %v717 = vpack.c.bf16 %v709, %v705
        %v718 = vpack.c.bf16 %v710, %v706
        %v719 = vpack.c.bf16 %v711, %v707
        %v720 = vpack.c.bf16 %v712, %v712
        %v721 = vpack.c.bf16 %v713, %v713
        %v722 = vpack.c.bf16 %v714, %v714
        %v723 = vpack.c.bf16 %v715, %v715
        %v724 = vld [vmem:[#allocation7] sm:$0xf]
        %v725 = vld [vmem:[#allocation7 + $0x4] sm:$0xf]
        %v726 = vld [vmem:[#allocation7 + $0x8] sm:$0xf]
        %v727 = vld [vmem:[#allocation7 + $0xc] sm:$0xf]
        %v728 = vld [vmem:[#allocation7 + $0x10] sm:$0xf]
        %v729 = vld [vmem:[#allocation7 + $0x14] sm:$0xf]
        %v730 = vld [vmem:[#allocation7 + $0x18] sm:$0xf]
        %v731 = vld [vmem:[#allocation7 + $0x1c] sm:$0xf]
        %v732 = vld [vmem:[#allocation7 + $0x20] sm:$0xf]
        %v733 = vld [vmem:[#allocation7 + $0x24] sm:$0xf]
        %v734 = vld [vmem:[#allocation7 + $0x28] sm:$0xf]
        %v735 = vld [vmem:[#allocation7 + $0x2c] sm:$0xf]
        %v736 = vld [vmem:[#allocation7 + $0x30] sm:$0xf]
        %v737 = vld [vmem:[#allocation7 + $0x34] sm:$0xf]
        %v738 = vld [vmem:[#allocation7 + $0x38] sm:$0xf]
        %v739 = vld [vmem:[#allocation7 + $0x3c] sm:$0xf]
        %v740 = vld [vmem:[#allocation7 + $0x40] sm:$0xf]
        %v741 = vld [vmem:[#allocation7 + $0x44] sm:$0xf]
        %v742 = vld [vmem:[#allocation7 + $0x48] sm:$0xf]
        %v743 = vld [vmem:[#allocation7 + $0x4c] sm:$0xf]
        %v744 = vld [vmem:[#allocation7 + $0x50] sm:$0xf]
        %v745 = vld [vmem:[#allocation7 + $0x54] sm:$0xf]
        %v746 = vld [vmem:[#allocation7 + $0x58] sm:$0xf]
        %v747 = vld [vmem:[#allocation7 + $0x5c] sm:$0xf]
        %v748 = vld [vmem:[#allocation7 + $0x60] sm:$0xf]
        %v749 = vld [vmem:[#allocation7 + $0x64] sm:$0xf]
        %v750 = vld [vmem:[#allocation7 + $0x68] sm:$0xf]
        %v751 = vld [vmem:[#allocation7 + $0x6c] sm:$0xf]
        %v752 = vld [vmem:[#allocation7 + $0x70] sm:$0xf]
        %v753 = vld [vmem:[#allocation7 + $0x74] sm:$0xf]
        %v754 = vld [vmem:[#allocation7 + $0x78] sm:$0xf]
        %v755 = vld [vmem:[#allocation7 + $0x7c] sm:$0xf]
        %v756 = vld [vmem:[#allocation7 + $0x80] sm:$0xf]
        %v757 = vld [vmem:[#allocation7 + $0x84] sm:$0xf]
        %v758 = vld [vmem:[#allocation7 + $0x88] sm:$0xf]
        %v759 = vld [vmem:[#allocation7 + $0x8c] sm:$0xf]
        %v760 = vld [vmem:[#allocation7 + $0x90] sm:$0xf]
        %v761 = vld [vmem:[#allocation7 + $0x94] sm:$0xf]
        %v762 = vld [vmem:[#allocation7 + $0x98] sm:$0xf]
        %v763 = vld [vmem:[#allocation7 + $0x9c] sm:$0xf]
        %v764 = vld [vmem:[#allocation7 + $0xa0] sm:$0xf]
        %v765 = vld [vmem:[#allocation7 + $0xa4] sm:$0xf]
        %v766 = vld [vmem:[#allocation7 + $0xa8] sm:$0xf]
        %v767 = vld [vmem:[#allocation7 + $0xac] sm:$0xf]
        %v768 = vld [vmem:[#allocation7 + $0xb0] sm:$0xf]
        %v769 = vld [vmem:[#allocation7 + $0xb4] sm:$0xf]
        %v770 = vld [vmem:[#allocation7 + $0xb8] sm:$0xf]
        %v771 = vld [vmem:[#allocation7 + $0xbc] sm:$0xf]
        %v772 = vld [vmem:[#allocation7 + $0xc0] sm:$0xf]
        %v773 = vld [vmem:[#allocation7 + $0xc4] sm:$0xf]
        %v774 = vld [vmem:[#allocation7 + $0xc8] sm:$0xf]
        %v775 = vld [vmem:[#allocation7 + $0xcc] sm:$0xf]
        %v776 = vld [vmem:[#allocation7 + $0xd0] sm:$0xf]
        %v777 = vld [vmem:[#allocation7 + $0xd4] sm:$0xf]
        %v778 = vld [vmem:[#allocation7 + $0xd8] sm:$0xf]
        %v779 = vld [vmem:[#allocation7 + $0xdc] sm:$0xf]
        %v780 = vld [vmem:[#allocation7 + $0xe0] sm:$0xf]
        %v781 = vld [vmem:[#allocation7 + $0xe4] sm:$0xf]
        %v782 = vld [vmem:[#allocation7 + $0xe8] sm:$0xf]
        %v783 = vld [vmem:[#allocation7 + $0xec] sm:$0xf]
        %v784 = vld [vmem:[#allocation7 + $0xf0] sm:$0xf]
        %v785 = vld [vmem:[#allocation7 + $0xf4] sm:$0xf]
        %v786 = vld [vmem:[#allocation7 + $0xf8] sm:$0xf]
        %v787 = vld [vmem:[#allocation7 + $0xfc] sm:$0xf]
        %v788 = vld [vmem:[%s6] sm:$0x1]
        %v790 = vlaneseq
        %v791 = vshrl.u32 %v790, 7
        %v792 = vsub.s32 0, %v791
        %v793 = vrot.slane %v788, %v792
        %v859 = vunpack.c.l.b16 %v724
        %v860 = vunpack.c.l.b16 %v725
        %v861 = vunpack.c.l.b16 %v726
        %v862 = vunpack.c.l.b16 %v727
        %v863 = vunpack.c.l.b16 %v728
        %v864 = vunpack.c.l.b16 %v729
        %v865 = vunpack.c.l.b16 %v730
        %v866 = vunpack.c.l.b16 %v731
        %v867 = vunpack.c.l.b16 %v732
        %v868 = vunpack.c.l.b16 %v733
        %v869 = vunpack.c.l.b16 %v734
        %v870 = vunpack.c.l.b16 %v735
        %v871 = vunpack.c.l.b16 %v736
        %v872 = vunpack.c.l.b16 %v737
        %v873 = vunpack.c.l.b16 %v738
        %v874 = vunpack.c.l.b16 %v739
        %v875 = vunpack.c.l.b16 %v740
        %v876 = vunpack.c.l.b16 %v741
        %v877 = vunpack.c.l.b16 %v742
        %v878 = vunpack.c.l.b16 %v743
        %v879 = vunpack.c.l.b16 %v744
        %v880 = vunpack.c.l.b16 %v745
        %v881 = vunpack.c.l.b16 %v746
        %v882 = vunpack.c.l.b16 %v747
        %v883 = vunpack.c.l.b16 %v748
        %v884 = vunpack.c.l.b16 %v749
        %v885 = vunpack.c.l.b16 %v750
        %v886 = vunpack.c.l.b16 %v751
        %v887 = vunpack.c.l.b16 %v752
        %v888 = vunpack.c.l.b16 %v753
        %v889 = vunpack.c.l.b16 %v754
        %v890 = vunpack.c.l.b16 %v755
        %v891 = vunpack.c.l.b16 %v756
        %v892 = vunpack.c.l.b16 %v757
        %v893 = vunpack.c.l.b16 %v758
        %v894 = vunpack.c.l.b16 %v759
        %v895 = vunpack.c.l.b16 %v760
        %v896 = vunpack.c.l.b16 %v761
        %v897 = vunpack.c.l.b16 %v762
        %v898 = vunpack.c.l.b16 %v763
        %v899 = vunpack.c.l.b16 %v764
        %v900 = vunpack.c.l.b16 %v765
        %v901 = vunpack.c.l.b16 %v766
        %v902 = vunpack.c.l.b16 %v767
        %v903 = vunpack.c.l.b16 %v768
        %v904 = vunpack.c.l.b16 %v769
        %v905 = vunpack.c.l.b16 %v770
        %v906 = vunpack.c.l.b16 %v771
        %v907 = vunpack.c.l.b16 %v772
        %v908 = vunpack.c.l.b16 %v773
        %v909 = vunpack.c.l.b16 %v774
        %v910 = vunpack.c.l.b16 %v775
        %v911 = vunpack.c.l.b16 %v776
        %v912 = vunpack.c.l.b16 %v777
        %v913 = vunpack.c.l.b16 %v778
        %v914 = vunpack.c.l.b16 %v779
        %v915 = vunpack.c.l.b16 %v780
        %v916 = vunpack.c.l.b16 %v781
        %v917 = vunpack.c.l.b16 %v782
        %v918 = vunpack.c.l.b16 %v783
        %v919 = vunpack.c.l.b16 %v784
        %v920 = vunpack.c.l.b16 %v785
        %v921 = vunpack.c.l.b16 %v786
        %v922 = vunpack.c.l.b16 %v787
        %v923 = vpack.c.b16 %v860, %v859
        %v924 = vpack.c.b16 %v862, %v861
        %v925 = vpack.c.b16 %v864, %v863
        %v926 = vpack.c.b16 %v866, %v865
        %v927 = vpack.c.b16 %v868, %v867
        %v928 = vpack.c.b16 %v870, %v869
        %v929 = vpack.c.b16 %v872, %v871
        %v930 = vpack.c.b16 %v874, %v873
        %v931 = vpack.c.b16 %v876, %v875
        %v932 = vpack.c.b16 %v878, %v877
        %v933 = vpack.c.b16 %v880, %v879
        %v934 = vpack.c.b16 %v882, %v881
        %v935 = vpack.c.b16 %v884, %v883
        %v936 = vpack.c.b16 %v886, %v885
        %v937 = vpack.c.b16 %v888, %v887
        %v938 = vpack.c.b16 %v890, %v889
        %v939 = vpack.c.b16 %v892, %v891
        %v940 = vpack.c.b16 %v894, %v893
        %v941 = vpack.c.b16 %v896, %v895
        %v942 = vpack.c.b16 %v898, %v897
        %v943 = vpack.c.b16 %v900, %v899
        %v944 = vpack.c.b16 %v902, %v901
        %v945 = vpack.c.b16 %v904, %v903
        %v946 = vpack.c.b16 %v906, %v905
        %v947 = vpack.c.b16 %v908, %v907
        %v948 = vpack.c.b16 %v910, %v909
        %v949 = vpack.c.b16 %v912, %v911
        %v950 = vpack.c.b16 %v914, %v913
        %v951 = vpack.c.b16 %v916, %v915
        %v952 = vpack.c.b16 %v918, %v917
        %v953 = vpack.c.b16 %v920, %v919
        %v954 = vpack.c.b16 %v922, %v921
        %987 = vmatprep.subr.bf16.mxu0 0
        %988 = vmatpush1.bf16.msra.mxu0 %v930
        %989 = vmatprep.subr.bf16.mxu0 0
        %990 = vmatpush1.bf16.msra.mxu0 %v929
        %991 = vmatprep.subr.bf16.mxu0 0
        %992 = vmatpush1.bf16.msra.mxu0 %v928
        %993 = vmatprep.subr.bf16.mxu0 0
        %994 = vmatpush1.bf16.msra.mxu0 %v927
        %995 = vmatprep.subr.bf16.mxu0 0
        %996 = vmatpush1.bf16.msra.mxu0 %v926
        %997 = vmatprep.subr.bf16.mxu0 0
        %998 = vmatpush1.bf16.msra.mxu0 %v925
        %999 = vmatprep.subr.bf16.mxu0 0
        %1000 = vmatpush1.bf16.msra.mxu0 %v924
        %1001 = vmatprep.subr.bf16.mxu0 0
        %1002 = vmatpush1.bf16.msra.mxu0 %v923
        %1003 = vmatprep.subr.bf16.mxu0 0
        %1004 = vmatpush2.bf16.msra.mxu0 %v938
        %1005 = vmatprep.subr.bf16.mxu0 0
        %1006 = vmatpush2.bf16.msra.mxu0 %v937
        %1007 = vmatprep.subr.bf16.mxu0 0
        %1008 = vmatpush2.bf16.msra.mxu0 %v936
        %1009 = vmatprep.subr.bf16.mxu0 0
        %1010 = vmatpush2.bf16.msra.mxu0 %v935
        %1011 = vmatprep.subr.bf16.mxu0 0
        %1012 = vmatpush2.bf16.msra.mxu0 %v934
        %1013 = vmatprep.subr.bf16.mxu0 0
        %1014 = vmatpush2.bf16.msra.mxu0 %v933
        %1015 = vmatprep.subr.bf16.mxu0 0
        %1016 = vmatpush2.bf16.msra.mxu0 %v932
        %1017 = vmatprep.subr.bf16.mxu0 0
        %1018 = vmatpush2.bf16.msra.mxu0 %v931
        %1019 = vmatprep.mubr.bf16.mxu0 %v717
        %1020 = vmatmul.mubr.bf16.gmra.mxu0 %v716
        %v1021 = vpop.f32.mrf.mxu0
        %v1022 = vadd.f32 %v793, %v1021
        %v1023 = vpop.f32.mrf.mxu0
        %v1024 = vpop.f32.mrf.mxu0
        %v1025 = vadd.f32 %v793, %v1024
        %v1026 = vpop.f32.mrf.mxu0
        %1027 = vmatprep.mubr.bf16.mxu0 %v721
        %1028 = vmatmul.mubr.bf16.gmra.mxu0 %v720
        %v1029 = vpop.f32.mrf.mxu0
        %v1030 = vadd.f32 %v793, %v1029
        %v1031 = vpop.f32.mrf.mxu0
        %v1032 = vpop.f32.mrf.mxu0
        %v1033 = vpop.f32.mrf.mxu0
        %1034 = vdwg.mxu0
        %1035 = vmatprep.subr.bf16.mxu0 0
        %1036 = vmatpush1.bf16.msra.mxu0 %v946
        %1037 = vmatprep.subr.bf16.mxu0 0
        %1038 = vmatpush1.bf16.msra.mxu0 %v945
        %1039 = vmatprep.subr.bf16.mxu0 0
        %1040 = vmatpush1.bf16.msra.mxu0 %v944
        %1041 = vmatprep.subr.bf16.mxu0 0
        %1042 = vmatpush1.bf16.msra.mxu0 %v943
        %1043 = vmatprep.subr.bf16.mxu0 0
        %1044 = vmatpush1.bf16.msra.mxu0 %v942
        %1045 = vmatprep.subr.bf16.mxu0 0
        %1046 = vmatpush1.bf16.msra.mxu0 %v941
        %1047 = vmatprep.subr.bf16.mxu0 0
        %1048 = vmatpush1.bf16.msra.mxu0 %v940
        %1049 = vmatprep.subr.bf16.mxu0 0
        %1050 = vmatpush1.bf16.msra.mxu0 %v939
        %1051 = vmatprep.subr.bf16.mxu0 0
        %1052 = vmatpush2.bf16.msra.mxu0 %v954
        %1053 = vmatprep.subr.bf16.mxu0 0
        %1054 = vmatpush2.bf16.msra.mxu0 %v953
        %1055 = vmatprep.subr.bf16.mxu0 0
        %1056 = vmatpush2.bf16.msra.mxu0 %v952
        %1057 = vmatprep.subr.bf16.mxu0 0
        %1058 = vmatpush2.bf16.msra.mxu0 %v951
        %1059 = vmatprep.subr.bf16.mxu0 0
        %1060 = vmatpush2.bf16.msra.mxu0 %v950
        %1061 = vmatprep.subr.bf16.mxu0 0
        %1062 = vmatpush2.bf16.msra.mxu0 %v949
        %1063 = vmatprep.subr.bf16.mxu0 0
        %1064 = vmatpush2.bf16.msra.mxu0 %v948
        %1065 = vmatprep.subr.bf16.mxu0 0
        %1066 = vmatpush2.bf16.msra.mxu0 %v947
        %1067 = vmatprep.mubr.bf16.mxu0 %v719
        %1068 = vmatmul.mubr.bf16.gmra.mxu0 %v718
        %v1069 = vpop.f32.mrf.mxu0
        %v1070 = vadd.f32 %v1022, %v1069
        %v1071 = vpop.f32.mrf.mxu0
        %v1072 = vpop.f32.mrf.mxu0
        %v1073 = vadd.f32 %v1025, %v1072
        %v1074 = vpop.f32.mrf.mxu0
        %1075 = vmatprep.mubr.bf16.mxu0 %v723
        %1076 = vmatmul.mubr.bf16.gmra.mxu0 %v722
        %v1077 = vpop.f32.mrf.mxu0
        %v1078 = vadd.f32 %v1030, %v1077
        %v1079 = vpop.f32.mrf.mxu0
        %v1080 = vpop.f32.mrf.mxu0
        %v1081 = vpop.f32.mrf.mxu0
        %1082 = vdwg.mxu0
        %1083 = vst [vmem:[%s325] sm:$0xff] %v1070
        %1084 = vst [vmem:[%s325 + $0x8] sm:$0xff] %v1073
        %1085 = vst [vmem:[%s325 + $0x10] sm:$0xff] %v1078
        %s1086 = sand.u32 %s185, 1
        %s1087 = scalar_lea.sflag [#allocation4], %s1086
        %s1088 = sand.u32 %s185, 1
        %s1089 = smul.addr %s1088, 24
        %s1090 = scalar_lea.vmem [#allocation8], %s1089
        // Predicated region
        $region61: #{tpu_custom_call.1} parent=47 // pred_check
          %p1091 = pneg %p195
        $region62: #{tpu_custom_call.1} parent=47 // pred_check_branch
          %1093 = sbr.rel (%p1091) target = $region64
        $region63: #{tpu_custom_call.1} parent=47 // pred_region
          %s1094 = smul.u32 3, %s25
          %s1096 = ssub.s32 384, 384
          %1097 = vsyncadd %s1087, %s1096
          %s1098 = smul.addr %s1094, 128
          %s1099 = scalar_lea.hbm %s7, %s1098
          %s1100 = sshll.u32 %s1090, 4
          %s1101 = int_to_ptr.vmem [resolvable:$true] %s1100
          %1106 = dma.vmem_to_hbm [thread:$0]  %s1101, 384, %s1099, %s1087, 128, 128, 8
        $region64: #{tpu_custom_call.1} parent=47 // pred_fallthru
          _
      $region48: #{tpu_custom_call.1} parent=5 // pred_fallthru
        _
      %p1107 = scmp.le.s32.totalorder 2, %s20
      // Predicated region
      $region65: #{tpu_custom_call.1} parent=5 // pred_check
        %p1108 = pneg %p1107
      $region66: #{tpu_custom_call.1} parent=5 // pred_check_branch
        %1110 = sbr.rel (%p1108) target = $region68
      $region67: #{tpu_custom_call.1} parent=5 // pred_region
        %s1111 = ssub.s32 %s20, 2
        // Predicated region
        $region69: #{tpu_custom_call.1} parent=67 // pred_check
          %p1112 = pneg %p201
        $region70: #{tpu_custom_call.1} parent=67 // pred_check_branch
          %1114 = sbr.rel (%p1112) target = $region72
        $region71: #{tpu_custom_call.1} parent=67 // pred_region
          %s1115 = sand.u32 %s186, 1
          %s1116 = scalar_lea.sflag [#allocation4], %s1115
          %s1117 = sand.u32 %s186, 1
          %s1118 = smul.addr %s1117, 24
          %s1119 = scalar_lea.vmem [#allocation8], %s1118
          %1120 = dma.done %s1116, 384
        $region72: #{tpu_custom_call.1} parent=67 // pred_fallthru
          _
      $region68: #{tpu_custom_call.1} parent=5 // pred_fallthru
        _
    $region6: #{tpu_custom_call.1} parent=1 // loop_footer
      %s24 = sadd.s32 1, %s20
    $region7: #{tpu_custom_call.1} parent=1 // loop_footer_branch
      %19 = sbr.rel target = $region3
    $region8: #{tpu_custom_call.1} parent=1 // loop_exit
      _
    %1121 = vsyncpa [#allocation3], 1
    %s1122 = scalar_lea.sflag [#allocation3], 1
    %1123 = vsyncpa %s1122, 1
    %1124 = vsyncpa [#allocation6], 1
    %1125 = vsyncpa [#allocation4], 1
    %s1126 = scalar_lea.sflag [#allocation4], 1
    %1127 = vsyncpa %s1126, 1

</llo_original>
